<compile_context>
chip_gen: v6e
topology: v6e:2x2x1
jax: 0.10.0
libtpu: 0.0.40
codegen_flags: <defaults>
</compile_context>

<pallas_src>
import functools

import jax
import jax.numpy as jnp
from jax.experimental import pallas as pl
from jax.experimental.pallas import tpu as pltpu

LANE = 128
SUBLANE = 8


def _round_up(x, m):
    return (x + m - 1) // m * m


def _mlp_kernel(n_linear, *refs):
    """Fused MLP forward for one batch tile.

    refs = (x_ref, w0_ref, ..., w{n-1}_ref, b_all_ref, o_ref)

    Weights are stored (in_features, out_features) (transposed vs torch) so
    h = x @ W + b runs on the MXU.  The last weight and the packed bias rows
    are zero-padded to a lane-dense 128-wide output.  Matmul inputs may be
    bf16; accumulation (preferred_element_type) and bias+ReLU stay f32.
    """
    x_ref = refs[0]
    w_refs = refs[1:1 + n_linear]
    b_ref = refs[1 + n_linear]
    o_ref = refs[-1]

    h = x_ref[...].astype(jnp.float32)
    for i in range(n_linear):
        w = w_refs[i][...]
        out_w = w.shape[1]
        b = b_ref[i:i + 1, :out_w]                      # (1, out_w) broadcast
        h = jnp.dot(h.astype(w.dtype), w,
                    preferred_element_type=jnp.float32) + b
        if i < n_linear - 1:                            # ReLU on all but last
            h = jnp.maximum(h, 0.0)
    o_ref[...] = h.astype(o_ref.dtype)


def neural_ode_forward(x, weights, biases, *, max_tile=512,
                       compute_dtype=jnp.float32):
    """Run the fused MLP Pallas kernel.

    Args:
      x:             (batch, input_num) f32
      weights:       list of (in_features, out_features) f32 arrays
      biases:        list of (1, out_features) f32 arrays
      max_tile:      max batch rows per grid step (kept small enough that
                     2x(x tile + out tile) + params fits easily in v7x VMEM)
      compute_dtype: dtype fed to the MXU (jnp.float32 or jnp.bfloat16);
                     accumulation and bias/ReLU are always f32.
    Returns:
      (batch, output_num) f32
    """
    # TODO(synk): for real ODE solvers, fuse multiple forward evaluations /
    # solver stages into one pallas_call (weights resident across a leading
    # grid axis) to amortize launch + weight-DMA cost; out of scope here.
    n_linear = len(weights)
    batch, in_dim = x.shape
    out_dim = weights[-1].shape[1]

    # ---- lane-dense output: pad final Linear to a multiple of 128 columns.
    out_pad = _round_up(max(out_dim, LANE), LANE)
    w_last = jnp.zeros((weights[-1].shape[0], out_pad), jnp.float32)
    w_last = w_last.at[:, :out_dim].set(weights[-1])
    padded_weights = [w.astype(compute_dtype) for w in weights[:-1]]
    padded_weights.append(w_last.astype(compute_dtype))

    # ---- pack all biases into one small VMEM-resident (n_linear, B) array.
    b_width = max(w.shape[1] for w in padded_weights)
    b_all = jnp.zeros((n_linear, b_width), jnp.float32)
    for i, b in enumerate(biases):
        b_all = b_all.at[i, :b.shape[-1]].set(b.reshape(-1))

    # ---- batch tiling (pad ragged batches with zero rows, sliced off below).
    tm = min(max_tile, _round_up(batch, SUBLANE))
    padded_batch = _round_up(batch, tm)
    if padded_batch != batch:
        x = jnp.pad(x, ((0, padded_batch - batch), (0, 0)))
    grid = (padded_batch // tm,)

    # x / out tiles stream along the batch grid; params are block (0, 0)
    # for every grid step -> resident in VMEM across all tiles.
    in_specs = [pl.BlockSpec((tm, in_dim), lambda i: (i, 0))]
    for w in padded_weights:
        in_specs.append(pl.BlockSpec(w.shape, lambda i: (0, 0)))
    in_specs.append(pl.BlockSpec(b_all.shape, lambda i: (0, 0)))
    out_specs = pl.BlockSpec((tm, out_pad), lambda i: (i, 0))

    itemsize = jnp.dtype(compute_dtype).itemsize
    flops = 2 * padded_batch * sum(w.shape[0] * w.shape[1]
                                   for w in padded_weights)
    bytes_accessed = (x.size * 4 + padded_batch * out_pad * 4
                      + sum(w.size for w in padded_weights) * itemsize
                      + b_all.size * 4)

    kernel = functools.partial(_mlp_kernel, n_linear)

    out_padded = pl.pallas_call(
        kernel,
        out_shape=jax.ShapeDtypeStruct((padded_batch, out_pad), jnp.float32),
        grid=grid,
        in_specs=in_specs,
        out_specs=out_specs,
        compiler_params=pltpu.CompilerParams(
            # batch tiles are independent -> shard across TCs on v7x
            dimension_semantics=("parallel",),
            # explicit cap: well under v7x's 64 MiB physical / 32 MiB scoped
            vmem_limit_bytes=32 * 1024 * 1024,
        ),
        cost_estimate=pl.CostEstimate(
            flops=flops, transcendentals=0, bytes_accessed=bytes_accessed),
    )(x, *padded_weights, b_all)

    return out_padded[:batch, :out_dim]


def init_params(key, input_num, output_num, hidden_units, layer):
    """PyTorch-default-style uniform(-1/sqrt(fan_in), 1/sqrt(fan_in)) init,
    matching the layer structure of NeuralODE_per_newlayer."""
    dims = [input_num] + [hidden_units] * layer + [output_num]
    weights, biases = [], []
    for i in range(len(dims) - 1):
        fan_in, fan_out = dims[i], dims[i + 1]
        key, kw, kb = jax.random.split(key, 3)
        bound = 1.0 / jnp.sqrt(jnp.float32(fan_in))
        # stored (in, out) i.e. transposed relative to torch's (out, in)
        w = jax.random.uniform(kw, (fan_in, fan_out), jnp.float32, -bound, bound)
        b = jax.random.uniform(kb, (1, fan_out), jnp.float32, -bound, bound)
        weights.append(w)
        biases.append(b)
    return weights, biases


def reference_forward(x, weights, biases):
    h = x
    n = len(weights)
    for i, (w, b) in enumerate(zip(weights, biases)):
        h = h @ w + b
        if i < n - 1:
            h = jnp.maximum(h, 0.0)
    return h


if __name__ == "__main__":
    # Module hyperparameters (small, consistent with the module's constructor).
    input_num = 4
    output_num = 2
    hidden_units = 32
    layer = 3          # -> 4 Linear layers total (first + 2 hidden + output)
    batch = 8

    key = jax.random.PRNGKey(0)
    key, kx = jax.random.split(key)
    x = jax.random.normal(kx, (batch, input_num), jnp.float32)

    weights, biases = init_params(key, input_num, output_num, hidden_units, layer)
    ref = reference_forward(x, weights, biases)

    # f32 path (exact vs reference).
    out = jax.block_until_ready(neural_ode_forward(x, weights, biases))
    assert out.shape == (batch, output_num)
    assert jnp.allclose(out, ref, atol=1e-5, rtol=1e-5)

    # Ragged batch path (exercises zero-pad + tile grid).
    batch2 = 70
    key, kx2 = jax.random.split(key)
    x2 = jax.random.normal(kx2, (batch2, input_num), jnp.float32)
    ref2 = reference_forward(x2, weights, biases)
    out2 = jax.block_until_ready(neural_ode_forward(x2, weights, biases))
    assert out2.shape == (batch2, output_num)
    assert jnp.allclose(out2, ref2, atol=1e-5, rtol=1e-5)

    # bf16-MXU path (v6e/v7x-friendly): f32 accumulate, loose tolerance.
    out_bf16 = jax.block_until_ready(
        neural_ode_forward(x, weights, biases, compute_dtype=jnp.bfloat16))
    assert out_bf16.shape == (batch, output_num)
    assert jnp.allclose(out_bf16, ref, atol=1e-1, rtol=1e-1)

    print("KERNEL_OK")
</pallas_src>

<mosaic_0001>
module attributes {stable_mosaic.version = 11 : i64} {
  func.func @_mlp_kernel(%arg0: i32, %arg1: memref<8x4xf32, #tpu.memory_space<vmem>>, %arg2: memref<4x32xf32, #tpu.memory_space<vmem>>, %arg3: memref<32x32xf32, #tpu.memory_space<vmem>>, %arg4: memref<32x32xf32, #tpu.memory_space<vmem>>, %arg5: memref<32x128xf32, #tpu.memory_space<vmem>>, %arg6: memref<4x128xf32, #tpu.memory_space<vmem>>, %arg7: memref<8x128xf32, #tpu.memory_space<vmem>>) attributes {dimension_semantics = [#tpu.dimension_semantics<parallel>], iteration_bounds = array<i64: 1>, scalar_prefetch = 0 : i64, scratch_operands = 0 : i64, tpu.core_type = #tpu.core_type<tc>, window_params = [{transform_indices = @transform_0, window_bounds = array<i64: 8, 4>}, {pipeline_mode = #tpu.pipeline_mode<synchronous>, transform_indices = @transform_1, window_bounds = array<i64: 4, 32>}, {pipeline_mode = #tpu.pipeline_mode<synchronous>, transform_indices = @transform_2, window_bounds = array<i64: 32, 32>}, {pipeline_mode = #tpu.pipeline_mode<synchronous>, transform_indices = @transform_3, window_bounds = array<i64: 32, 32>}, {pipeline_mode = #tpu.pipeline_mode<synchronous>, transform_indices = @transform_4, window_bounds = array<i64: 32, 128>}, {pipeline_mode = #tpu.pipeline_mode<synchronous>, transform_indices = @transform_5, window_bounds = array<i64: 4, 128>}, {transform_indices = @transform_6, window_bounds = array<i64: 8, 128>}]} {
    %c0 = arith.constant 0 : index
    %c0_0 = arith.constant 0 : index
    %0 = vector.load %arg1[%c0, %c0_0] : memref<8x4xf32, #tpu.memory_space<vmem>>, vector<8x4xf32>
    %c0_1 = arith.constant 0 : index
    %c0_2 = arith.constant 0 : index
    %1 = vector.load %arg2[%c0_1, %c0_2] : memref<4x32xf32, #tpu.memory_space<vmem>>, vector<4x32xf32>
    %c0_3 = arith.constant 0 : index
    %c0_4 = arith.constant 0 : index
    %2 = vector.load %arg6[%c0_3, %c0_4] : memref<4x128xf32, #tpu.memory_space<vmem>>, vector<1x32xf32>
    %cst = arith.constant dense<0.000000e+00> : vector<8x32xf32>
    %3 = tpu.matmul %0, %1, %cst {dimension_numbers = #tpu.dot_dimension_numbers<[1], [0], [0], [1], [0, 0, 1, 1], [], []>} : vector<8x4xf32>, vector<4x32xf32>, vector<8x32xf32> -> vector<8x32xf32>
    %4 = vector.broadcast %2 : vector<1x32xf32> to vector<8x32xf32>
    %5 = arith.addf %3, %4 : vector<8x32xf32>
    %cst_5 = arith.constant 0.000000e+00 : f32
    %6 = vector.broadcast %cst_5 : f32 to vector<8x32xf32>
    %7 = arith.maximumf %5, %6 : vector<8x32xf32>
    %c0_6 = arith.constant 0 : index
    %c0_7 = arith.constant 0 : index
    %8 = vector.load %arg3[%c0_6, %c0_7] : memref<32x32xf32, #tpu.memory_space<vmem>>, vector<32x32xf32>
    %c1 = arith.constant 1 : index
    %c0_8 = arith.constant 0 : index
    %9 = vector.load %arg6[%c1, %c0_8] : memref<4x128xf32, #tpu.memory_space<vmem>>, vector<1x32xf32>
    %cst_9 = arith.constant dense<0.000000e+00> : vector<8x32xf32>
    %10 = tpu.matmul %7, %8, %cst_9 {dimension_numbers = #tpu.dot_dimension_numbers<[1], [0], [0], [1], [0, 0, 1, 1], [], []>} : vector<8x32xf32>, vector<32x32xf32>, vector<8x32xf32> -> vector<8x32xf32>
    %11 = vector.broadcast %9 : vector<1x32xf32> to vector<8x32xf32>
    %12 = arith.addf %10, %11 : vector<8x32xf32>
    %cst_10 = arith.constant 0.000000e+00 : f32
    %13 = vector.broadcast %cst_10 : f32 to vector<8x32xf32>
    %14 = arith.maximumf %12, %13 : vector<8x32xf32>
    %c0_11 = arith.constant 0 : index
    %c0_12 = arith.constant 0 : index
    %15 = vector.load %arg4[%c0_11, %c0_12] : memref<32x32xf32, #tpu.memory_space<vmem>>, vector<32x32xf32>
    %c2 = arith.constant 2 : index
    %c0_13 = arith.constant 0 : index
    %16 = vector.load %arg6[%c2, %c0_13] : memref<4x128xf32, #tpu.memory_space<vmem>>, vector<1x32xf32>
    %cst_14 = arith.constant dense<0.000000e+00> : vector<8x32xf32>
    %17 = tpu.matmul %14, %15, %cst_14 {dimension_numbers = #tpu.dot_dimension_numbers<[1], [0], [0], [1], [0, 0, 1, 1], [], []>} : vector<8x32xf32>, vector<32x32xf32>, vector<8x32xf32> -> vector<8x32xf32>
    %18 = vector.broadcast %16 : vector<1x32xf32> to vector<8x32xf32>
    %19 = arith.addf %17, %18 : vector<8x32xf32>
    %cst_15 = arith.constant 0.000000e+00 : f32
    %20 = vector.broadcast %cst_15 : f32 to vector<8x32xf32>
    %21 = arith.maximumf %19, %20 : vector<8x32xf32>
    %c0_16 = arith.constant 0 : index
    %c0_17 = arith.constant 0 : index
    %22 = vector.load %arg5[%c0_16, %c0_17] : memref<32x128xf32, #tpu.memory_space<vmem>>, vector<32x128xf32>
    %c3 = arith.constant 3 : index
    %c0_18 = arith.constant 0 : index
    %23 = vector.load %arg6[%c3, %c0_18] : memref<4x128xf32, #tpu.memory_space<vmem>>, vector<1x128xf32>
    %cst_19 = arith.constant dense<0.000000e+00> : vector<8x128xf32>
    %24 = tpu.matmul %21, %22, %cst_19 {dimension_numbers = #tpu.dot_dimension_numbers<[1], [0], [0], [1], [0, 0, 1, 1], [], []>} : vector<8x32xf32>, vector<32x128xf32>, vector<8x128xf32> -> vector<8x128xf32>
    %25 = vector.broadcast %23 : vector<1x128xf32> to vector<8x128xf32>
    %26 = arith.addf %24, %25 : vector<8x128xf32>
    %c0_20 = arith.constant 0 : index
    %c0_21 = arith.constant 0 : index
    %27 = vector.load %arg7[%c0_20, %c0_21] : memref<8x128xf32, #tpu.memory_space<vmem>>, vector<8x128xf32>
    tpu.vector_store %arg7[%c0_20, %c0_21], %26 {strides = array<i32>} : memref<8x128xf32, #tpu.memory_space<vmem>>, vector<8x128xf32>,
    return
  }
  func.func @transform_0(%arg0: i32) -> (i32, i32) {
    %c0_i32 = arith.constant 0 : i32
    %c0_i32_0 = arith.constant 0 : i32
    return %arg0, %c0_i32 : i32, i32
  }
  func.func @transform_1(%arg0: i32) -> (i32, i32) {
    %c0_i32 = arith.constant 0 : i32
    %c0_i32_0 = arith.constant 0 : i32
    %c0_i32_1 = arith.constant 0 : i32
    return %c0_i32, %c0_i32_0 : i32, i32
  }
  func.func @transform_2(%arg0: i32) -> (i32, i32) {
    %c0_i32 = arith.constant 0 : i32
    %c0_i32_0 = arith.constant 0 : i32
    %c0_i32_1 = arith.constant 0 : i32
    return %c0_i32, %c0_i32_0 : i32, i32
  }
  func.func @transform_3(%arg0: i32) -> (i32, i32) {
    %c0_i32 = arith.constant 0 : i32
    %c0_i32_0 = arith.constant 0 : i32
    %c0_i32_1 = arith.constant 0 : i32
    return %c0_i32, %c0_i32_0 : i32, i32
  }
  func.func @transform_4(%arg0: i32) -> (i32, i32) {
    %c0_i32 = arith.constant 0 : i32
    %c0_i32_0 = arith.constant 0 : i32
    %c0_i32_1 = arith.constant 0 : i32
    return %c0_i32, %c0_i32_0 : i32, i32
  }
  func.func @transform_5(%arg0: i32) -> (i32, i32) {
    %c0_i32 = arith.constant 0 : i32
    %c0_i32_0 = arith.constant 0 : i32
    %c0_i32_1 = arith.constant 0 : i32
    return %c0_i32, %c0_i32_0 : i32, i32
  }
  func.func @transform_6(%arg0: i32) -> (i32, i32) {
    %c0_i32 = arith.constant 0 : i32
    %c0_i32_0 = arith.constant 0 : i32
    return %arg0, %c0_i32 : i32, i32
  }
}

</mosaic_0001>

<llo_original>
// kernel: tpu_custom_call.1
$region0: #{tpu_custom_call.1}
  #allocation0 [shape = 'u32[]', space=smem, size = 0x4, offset = 0x4, fixed_abs, tag = 'smem constant byte address 0x4 - core index']
  #allocation1 [shape = 'u32[144,128]{1,0:T(1,128)}', space=vmem, size = 0x12000, scoped, tag = 'internal scratch']
  %s0 = inlined_call_operand.vmem [shape: f32[8,4], index: 0, kind: input, shape index: {}]
  %s1 = inlined_call_operand.vmem [shape: f32[4,32], index: 1, kind: input, shape index: {}]
  %s2 = inlined_call_operand.hbm [shape: f32[32,32], index: 2, kind: input, shape index: {}]
  %s3 = inlined_call_operand.hbm [shape: f32[32,32], index: 3, kind: input, shape index: {}]
  %s4 = inlined_call_operand.hbm [shape: f32[32,128], index: 4, kind: input, shape index: {}]
  %s5 = inlined_call_operand.vmem [shape: f32[4,128], index: 5, kind: input, shape index: {}]
  %s6 = inlined_call_operand.hbm [shape: f32[8,128], index: 6, kind: output, shape index: {}]
  %s7 = sld [smem:[#allocation0]]
  $region46: #{tpu_custom_call.1} parent=0
    _
  %s9 = ssub.s32 1, %s7
  %s10 = scalar_select 0, %s9, %s7
  $region1: #{tpu_custom_call.1} parent=0
    #allocation2 [shape = 'u8[16384]{0}', space=vmem, size = 0x4000, scoped, tag = 'input window, operand 2, single buffered']
    #allocation3 [shape = 's32[1]{0}', space=sflag, size = 0x4, scoped, tag = 'scoped memory for tpu_custom_call.1']
    #allocation4 [shape = 's32[1]{0}', space=sflag, size = 0x4, scoped, tag = 'scoped memory for tpu_custom_call.1']
    #allocation5 [shape = 'u8[16384]{0}', space=vmem, size = 0x4000, scoped, tag = 'input window, operand 3, single buffered']
    #allocation6 [shape = 's32[1]{0}', space=sflag, size = 0x4, scoped, tag = 'scoped memory for tpu_custom_call.1']
    #allocation7 [shape = 'u8[16384]{0}', space=vmem, size = 0x4000, scoped, tag = 'input window, operand 4, single buffered']
    #allocation8 [shape = 'u8[4096]{0}', space=vmem, size = 0x1000, scoped, tag = 'output window, operand 0, single buffered']
    %11 = vsyncpa [#allocation3], 0
    %12 = vsyncpa [#allocation6], 0
    %13 = vsyncpa [#allocation4], 0
    // Predicated region
    $region2: #{tpu_custom_call.1} parent=1 // pred_check
      _
    $region3: #{tpu_custom_call.1} parent=1 // pred_check_branch
      %15 = sbr.rel (0) target = $region5
    $region4: #{tpu_custom_call.1} parent=1 // pred_region
      _
    $region5: #{tpu_custom_call.1} parent=1 // pred_fallthru
      _
    // Predicated region
    $region6: #{tpu_custom_call.1} parent=1 // pred_check
      _
    $region7: #{tpu_custom_call.1} parent=1 // pred_check_branch
      %17 = sbr.rel (0) target = $region9
    $region8: #{tpu_custom_call.1} parent=1 // pred_region
      _
    $region9: #{tpu_custom_call.1} parent=1 // pred_fallthru
      _
    // Predicated region
    $region10: #{tpu_custom_call.1} parent=1 // pred_check
      _
    $region11: #{tpu_custom_call.1} parent=1 // pred_check_branch
      %19 = sbr.rel (0) target = $region13
    $region12: #{tpu_custom_call.1} parent=1 // pred_region
      %s21 = ssub.s32 512, 512
      %22 = vsyncadd [#allocation3], %s21
      %s23 = sshll.u32 [#allocation2], 4
      %s24 = int_to_ptr.vmem [resolvable:$true] %s23
      %29 = dma.hbm_to_vmem [thread:$0]  %s2, 512, %s24, [#allocation3], 128, 128, 8
    $region13: #{tpu_custom_call.1} parent=1 // pred_fallthru
      _
    // Predicated region
    $region14: #{tpu_custom_call.1} parent=1 // pred_check
      _
    $region15: #{tpu_custom_call.1} parent=1 // pred_check_branch
      %31 = sbr.rel (0) target = $region17
    $region16: #{tpu_custom_call.1} parent=1 // pred_region
      %s33 = ssub.s32 512, 512
      %34 = vsyncadd [#allocation6], %s33
      %s35 = sshll.u32 [#allocation5], 4
      %s36 = int_to_ptr.vmem [resolvable:$true] %s35
      %41 = dma.hbm_to_vmem [thread:$0]  %s3, 512, %s36, [#allocation6], 128, 128, 8
    $region17: #{tpu_custom_call.1} parent=1 // pred_fallthru
      _
    // Predicated region
    $region18: #{tpu_custom_call.1} parent=1 // pred_check
      _
    $region19: #{tpu_custom_call.1} parent=1 // pred_check_branch
      %43 = sbr.rel (0) target = $region21
    $region20: #{tpu_custom_call.1} parent=1 // pred_region
      %s45 = ssub.s32 512, 512
      %46 = vsyncadd [#allocation6], %s45
      %s47 = sshll.u32 [#allocation7], 4
      %s48 = int_to_ptr.vmem [resolvable:$true] %s47
      %53 = dma.hbm_to_vmem [thread:$0]  %s4, 512, %s48, [#allocation6], 128, 128, 8
    $region21: #{tpu_custom_call.1} parent=1 // pred_fallthru
      _
    // Predicated region
    $region22: #{tpu_custom_call.1} parent=1 // pred_check
      _
    $region23: #{tpu_custom_call.1} parent=1 // pred_check_branch
      %55 = sbr.rel (0) target = $region25
    $region24: #{tpu_custom_call.1} parent=1 // pred_region
      _
    $region25: #{tpu_custom_call.1} parent=1 // pred_fallthru
      _
    // Predicated region
    $region26: #{tpu_custom_call.1} parent=1 // pred_check
      _
    $region27: #{tpu_custom_call.1} parent=1 // pred_check_branch
      %57 = sbr.rel (0) target = $region29
    $region28: #{tpu_custom_call.1} parent=1 // pred_region
      %58 = dma.done [#allocation3], 512
    $region29: #{tpu_custom_call.1} parent=1 // pred_fallthru
      _
    // Predicated region
    $region30: #{tpu_custom_call.1} parent=1 // pred_check
      _
    $region31: #{tpu_custom_call.1} parent=1 // pred_check_branch
      %60 = sbr.rel (0) target = $region33
    $region32: #{tpu_custom_call.1} parent=1 // pred_region
      %61 = dma.done [#allocation6], 512
    $region33: #{tpu_custom_call.1} parent=1 // pred_fallthru
      _
    // Predicated region
    $region34: #{tpu_custom_call.1} parent=1 // pred_check
      _
    $region35: #{tpu_custom_call.1} parent=1 // pred_check_branch
      %63 = sbr.rel (0) target = $region37
    $region36: #{tpu_custom_call.1} parent=1 // pred_region
      %64 = dma.done [#allocation6], 512
    $region37: #{tpu_custom_call.1} parent=1 // pred_fallthru
      _
    %v65 = vld [vmem:[%s0] sm:$0xff]
    %v66 = vld [vmem:[%s1] sm:$0xf]
    %v67 = vld [vmem:[%s5] sm:$0x1]
    %v68 = vlaneseq
    %v69 = vshrl.u32 %v68, 7
    %v70 = vsub.s32 0, %v69
    %v71 = vrot.slane %v67, %v70
    %vm72 = vcmask 31744
    %v74 = vsel %vm72, %v65, 0
    %vm76 = vcmask 1043456
    %v78 = vsel %vm76, %v66, 0
    %80 = vmatprep.subr.mxu0 0.0
    %81 = vmatpush1.msra.mxu0 0.0
    %82 = vmatprep.subr.mxu0 0.0
    %83 = vmatpush1.msra.mxu0 0.0
    %84 = vmatprep.subr.mxu0 0.0
    %85 = vmatpush1.msra.mxu0 0.0
    %86 = vmatprep.subr.mxu0 0.0
    %87 = vmatpush1.msra.mxu0 0.0
    %88 = vmatprep.subr.mxu0 0.0
    %89 = vmatpush1.msra.mxu0 0.0
    %90 = vmatprep.subr.mxu0 0.0
    %91 = vmatpush1.msra.mxu0 0.0
    %92 = vmatprep.subr.mxu0 0.0
    %93 = vmatpush1.msra.mxu0 0.0
    %94 = vmatprep.subr.mxu0 0.0
    %95 = vmatpush1.msra.mxu0 0.0
    %96 = vmatprep.subr.mxu0 0.0
    %97 = vmatpush1.msra.mxu0 0.0
    %98 = vmatprep.subr.mxu0 0.0
    %99 = vmatpush1.msra.mxu0 0.0
    %100 = vmatprep.subr.mxu0 0.0
    %101 = vmatpush1.msra.mxu0 0.0
    %102 = vmatprep.subr.mxu0 0.0
    %103 = vmatpush1.msra.mxu0 0.0
    %104 = vmatprep.subr.mxu0 0.0
    %105 = vmatpush1.msra.mxu0 0.0
    %106 = vmatprep.subr.mxu0 0.0
    %107 = vmatpush1.msra.mxu0 0.0
    %108 = vmatprep.subr.mxu0 0.0
    %109 = vmatpush1.msra.mxu0 0.0
    %110 = vmatprep.subr.mxu0 0.0
    %111 = vmatpush1.msra.mxu0 %v78
    %112 = vmatprep.subr.mxu0 0.0
    %113 = vmatpush2.msra.mxu0 0.0
    %114 = vmatprep.subr.mxu0 0.0
    %115 = vmatpush2.msra.mxu0 0.0
    %116 = vmatprep.subr.mxu0 0.0
    %117 = vmatpush2.msra.mxu0 0.0
    %118 = vmatprep.subr.mxu0 0.0
    %119 = vmatpush2.msra.mxu0 0.0
    %120 = vmatprep.subr.mxu0 0.0
    %121 = vmatpush2.msra.mxu0 0.0
    %122 = vmatprep.subr.mxu0 0.0
    %123 = vmatpush2.msra.mxu0 0.0
    %124 = vmatprep.subr.mxu0 0.0
    %125 = vmatpush2.msra.mxu0 0.0
    %126 = vmatprep.subr.mxu0 0.0
    %127 = vmatpush2.msra.mxu0 0.0
    %128 = vmatprep.subr.mxu0 0.0
    %129 = vmatpush2.msra.mxu0 0.0
    %130 = vmatprep.subr.mxu0 0.0
    %131 = vmatpush2.msra.mxu0 0.0
    %132 = vmatprep.subr.mxu0 0.0
    %133 = vmatpush2.msra.mxu0 0.0
    %134 = vmatprep.subr.mxu0 0.0
    %135 = vmatpush2.msra.mxu0 0.0
    %136 = vmatprep.subr.mxu0 0.0
    %137 = vmatpush2.msra.mxu0 0.0
    %138 = vmatprep.subr.mxu0 0.0
    %139 = vmatpush2.msra.mxu0 0.0
    %140 = vmatprep.subr.mxu0 0.0
    %141 = vmatpush2.msra.mxu0 0.0
    %142 = vmatprep.subr.mxu0 0.0
    %143 = vmatpush2.msra.mxu0 0.0
    %144 = vmatprep.mubr.f32.mxu0 0.0
    %145 = vmatmul.mubr.f32.gmra.mxu0 %v74
    %v146 = vpop.f32.mrf.mxu0
    %v147 = vadd.f32 %v71, %v146
    %v148 = vpop.f32.mrf.mxu0
    %149 = vdwg.mxu0
    %v150 = vmax.f32 %v147, 0.0
    %v151 = vld [vmem:[#allocation2] sm:$0xff]
    %v152 = vld [vmem:[#allocation2 + $0x8] sm:$0xff]
    %v153 = vld [vmem:[#allocation2 + $0x10] sm:$0xff]
    %v154 = vld [vmem:[#allocation2 + $0x18] sm:$0xff]
    %v155 = vld [vmem:[%s5 + $0x1] sm:$0x1]
    %v156 = vlaneseq
    %v157 = vshrl.u32 %v156, 7
    %v158 = vsub.s32 0, %v157
    %v159 = vrot.slane %v155, %v158
    %vm160 = vcmask 261120
    %v162 = vsel %vm160, %v150, 0
    %164 = vmatprep.subr.mxu0 0.0
    %165 = vmatpush1.msra.mxu0 0.0
    %166 = vmatprep.subr.mxu0 0.0
    %167 = vmatpush1.msra.mxu0 0.0
    %168 = vmatprep.subr.mxu0 0.0
    %169 = vmatpush1.msra.mxu0 0.0
    %170 = vmatprep.subr.mxu0 0.0
    %171 = vmatpush1.msra.mxu0 0.0
    %172 = vmatprep.subr.mxu0 0.0
    %173 = vmatpush1.msra.mxu0 0.0
    %174 = vmatprep.subr.mxu0 0.0
    %175 = vmatpush1.msra.mxu0 0.0
    %176 = vmatprep.subr.mxu0 0.0
    %177 = vmatpush1.msra.mxu0 0.0
    %178 = vmatprep.subr.mxu0 0.0
    %179 = vmatpush1.msra.mxu0 0.0
    %180 = vmatprep.subr.mxu0 0.0
    %181 = vmatpush1.msra.mxu0 0.0
    %182 = vmatprep.subr.mxu0 0.0
    %183 = vmatpush1.msra.mxu0 0.0
    %184 = vmatprep.subr.mxu0 0.0
    %185 = vmatpush1.msra.mxu0 0.0
    %186 = vmatprep.subr.mxu0 0.0
    %187 = vmatpush1.msra.mxu0 0.0
    %188 = vmatprep.subr.mxu0 0.0
    %189 = vmatpush1.msra.mxu0 %v154
    %190 = vmatprep.subr.mxu0 0.0
    %191 = vmatpush1.msra.mxu0 %v153
    %192 = vmatprep.subr.mxu0 0.0
    %193 = vmatpush1.msra.mxu0 %v152
    %194 = vmatprep.subr.mxu0 0.0
    %195 = vmatpush1.msra.mxu0 %v151
    %196 = vmatprep.subr.mxu0 0.0
    %197 = vmatpush2.msra.mxu0 0.0
    %198 = vmatprep.subr.mxu0 0.0
    %199 = vmatpush2.msra.mxu0 0.0
    %200 = vmatprep.subr.mxu0 0.0
    %201 = vmatpush2.msra.mxu0 0.0
    %202 = vmatprep.subr.mxu0 0.0
    %203 = vmatpush2.msra.mxu0 0.0
    %204 = vmatprep.subr.mxu0 0.0
    %205 = vmatpush2.msra.mxu0 0.0
    %206 = vmatprep.subr.mxu0 0.0
    %207 = vmatpush2.msra.mxu0 0.0
    %208 = vmatprep.subr.mxu0 0.0
    %209 = vmatpush2.msra.mxu0 0.0
    %210 = vmatprep.subr.mxu0 0.0
    %211 = vmatpush2.msra.mxu0 0.0
    %212 = vmatprep.subr.mxu0 0.0
    %213 = vmatpush2.msra.mxu0 0.0
    %214 = vmatprep.subr.mxu0 0.0
    %215 = vmatpush2.msra.mxu0 0.0
    %216 = vmatprep.subr.mxu0 0.0
    %217 = vmatpush2.msra.mxu0 0.0
    %218 = vmatprep.subr.mxu0 0.0
    %219 = vmatpush2.msra.mxu0 0.0
    %220 = vmatprep.subr.mxu0 0.0
    %221 = vmatpush2.msra.mxu0 0.0
    %222 = vmatprep.subr.mxu0 0.0
    %223 = vmatpush2.msra.mxu0 0.0
    %224 = vmatprep.subr.mxu0 0.0
    %225 = vmatpush2.msra.mxu0 0.0
    %226 = vmatprep.subr.mxu0 0.0
    %227 = vmatpush2.msra.mxu0 0.0
    %228 = vmatprep.mubr.f32.mxu0 0.0
    %229 = vmatmul.mubr.f32.gmra.mxu0 %v162
    %v230 = vpop.f32.mrf.mxu0
    %v231 = vadd.f32 %v159, %v230
    %v232 = vpop.f32.mrf.mxu0
    %233 = vdwg.mxu0
    %v234 = vmax.f32 %v231, 0.0
    %v235 = vld [vmem:[#allocation5] sm:$0xff]
    %v236 = vld [vmem:[#allocation5 + $0x8] sm:$0xff]
    %v237 = vld [vmem:[#allocation5 + $0x10] sm:$0xff]
    %v238 = vld [vmem:[#allocation5 + $0x18] sm:$0xff]
    %v239 = vld [vmem:[%s5 + $0x2] sm:$0x1]
    %v240 = vlaneseq
    %v241 = vshrl.u32 %v240, 7
    %v242 = vsub.s32 0, %v241
    %v243 = vrot.slane %v239, %v242
    %v245 = vsel %vm160, %v234, 0
    %247 = vmatprep.subr.mxu0 0.0
    %248 = vmatpush1.msra.mxu0 0.0
    %249 = vmatprep.subr.mxu0 0.0
    %250 = vmatpush1.msra.mxu0 0.0
    %251 = vmatprep.subr.mxu0 0.0
    %252 = vmatpush1.msra.mxu0 0.0
    %253 = vmatprep.subr.mxu0 0.0
    %254 = vmatpush1.msra.mxu0 0.0
    %255 = vmatprep.subr.mxu0 0.0
    %256 = vmatpush1.msra.mxu0 0.0
    %257 = vmatprep.subr.mxu0 0.0
    %258 = vmatpush1.msra.mxu0 0.0
    %259 = vmatprep.subr.mxu0 0.0
    %260 = vmatpush1.msra.mxu0 0.0
    %261 = vmatprep.subr.mxu0 0.0
    %262 = vmatpush1.msra.mxu0 0.0
    %263 = vmatprep.subr.mxu0 0.0
    %264 = vmatpush1.msra.mxu0 0.0
    %265 = vmatprep.subr.mxu0 0.0
    %266 = vmatpush1.msra.mxu0 0.0
    %267 = vmatprep.subr.mxu0 0.0
    %268 = vmatpush1.msra.mxu0 0.0
    %269 = vmatprep.subr.mxu0 0.0
    %270 = vmatpush1.msra.mxu0 0.0
    %271 = vmatprep.subr.mxu0 0.0
    %272 = vmatpush1.msra.mxu0 %v238
    %273 = vmatprep.subr.mxu0 0.0
    %274 = vmatpush1.msra.mxu0 %v237
    %275 = vmatprep.subr.mxu0 0.0
    %276 = vmatpush1.msra.mxu0 %v236
    %277 = vmatprep.subr.mxu0 0.0
    %278 = vmatpush1.msra.mxu0 %v235
    %279 = vmatprep.subr.mxu0 0.0
    %280 = vmatpush2.msra.mxu0 0.0
    %281 = vmatprep.subr.mxu0 0.0
    %282 = vmatpush2.msra.mxu0 0.0
    %283 = vmatprep.subr.mxu0 0.0
    %284 = vmatpush2.msra.mxu0 0.0
    %285 = vmatprep.subr.mxu0 0.0
    %286 = vmatpush2.msra.mxu0 0.0
    %287 = vmatprep.subr.mxu0 0.0
    %288 = vmatpush2.msra.mxu0 0.0
    %289 = vmatprep.subr.mxu0 0.0
    %290 = vmatpush2.msra.mxu0 0.0
    %291 = vmatprep.subr.mxu0 0.0
    %292 = vmatpush2.msra.mxu0 0.0
    %293 = vmatprep.subr.mxu0 0.0
    %294 = vmatpush2.msra.mxu0 0.0
    %295 = vmatprep.subr.mxu0 0.0
    %296 = vmatpush2.msra.mxu0 0.0
    %297 = vmatprep.subr.mxu0 0.0
    %298 = vmatpush2.msra.mxu0 0.0
    %299 = vmatprep.subr.mxu0 0.0
    %300 = vmatpush2.msra.mxu0 0.0
    %301 = vmatprep.subr.mxu0 0.0
    %302 = vmatpush2.msra.mxu0 0.0
    %303 = vmatprep.subr.mxu0 0.0
    %304 = vmatpush2.msra.mxu0 0.0
    %305 = vmatprep.subr.mxu0 0.0
    %306 = vmatpush2.msra.mxu0 0.0
    %307 = vmatprep.subr.mxu0 0.0
    %308 = vmatpush2.msra.mxu0 0.0
    %309 = vmatprep.subr.mxu0 0.0
    %310 = vmatpush2.msra.mxu0 0.0
    %311 = vmatprep.mubr.f32.mxu0 0.0
    %312 = vmatmul.mubr.f32.gmra.mxu0 %v245
    %v313 = vpop.f32.mrf.mxu0
    %v314 = vadd.f32 %v243, %v313
    %v315 = vpop.f32.mrf.mxu0
    %316 = vdwg.mxu0
    %v317 = vmax.f32 %v314, 0.0
    %v318 = vld [vmem:[#allocation7] sm:$0xff]
    %v319 = vld [vmem:[#allocation7 + $0x8] sm:$0xff]
    %v320 = vld [vmem:[#allocation7 + $0x10] sm:$0xff]
    %v321 = vld [vmem:[#allocation7 + $0x18] sm:$0xff]
    %v322 = vld [vmem:[%s5 + $0x3] sm:$0x1]
    %v323 = vlaneseq
    %v324 = vshrl.u32 %v323, 7
    %v325 = vsub.s32 0, %v324
    %v326 = vrot.slane %v322, %v325
    %v328 = vsel %vm160, %v317, 0
    %330 = vmatprep.subr.mxu0 0.0
    %331 = vmatpush1.msra.mxu0 0.0
    %332 = vmatprep.subr.mxu0 0.0
    %333 = vmatpush1.msra.mxu0 0.0
    %334 = vmatprep.subr.mxu0 0.0
    %335 = vmatpush1.msra.mxu0 0.0
    %336 = vmatprep.subr.mxu0 0.0
    %337 = vmatpush1.msra.mxu0 0.0
    %338 = vmatprep.subr.mxu0 0.0
    %339 = vmatpush1.msra.mxu0 0.0
    %340 = vmatprep.subr.mxu0 0.0
    %341 = vmatpush1.msra.mxu0 0.0
    %342 = vmatprep.subr.mxu0 0.0
    %343 = vmatpush1.msra.mxu0 0.0
    %344 = vmatprep.subr.mxu0 0.0
    %345 = vmatpush1.msra.mxu0 0.0
    %346 = vmatprep.subr.mxu0 0.0
    %347 = vmatpush1.msra.mxu0 0.0
    %348 = vmatprep.subr.mxu0 0.0
    %349 = vmatpush1.msra.mxu0 0.0
    %350 = vmatprep.subr.mxu0 0.0
    %351 = vmatpush1.msra.mxu0 0.0
    %352 = vmatprep.subr.mxu0 0.0
    %353 = vmatpush1.msra.mxu0 0.0
    %354 = vmatprep.subr.mxu0 0.0
    %355 = vmatpush1.msra.mxu0 %v321
    %356 = vmatprep.subr.mxu0 0.0
    %357 = vmatpush1.msra.mxu0 %v320
    %358 = vmatprep.subr.mxu0 0.0
    %359 = vmatpush1.msra.mxu0 %v319
    %360 = vmatprep.subr.mxu0 0.0
    %361 = vmatpush1.msra.mxu0 %v318
    %362 = vmatprep.subr.mxu0 0.0
    %363 = vmatpush2.msra.mxu0 0.0
    %364 = vmatprep.subr.mxu0 0.0
    %365 = vmatpush2.msra.mxu0 0.0
    %366 = vmatprep.subr.mxu0 0.0
    %367 = vmatpush2.msra.mxu0 0.0
    %368 = vmatprep.subr.mxu0 0.0
    %369 = vmatpush2.msra.mxu0 0.0
    %370 = vmatprep.subr.mxu0 0.0
    %371 = vmatpush2.msra.mxu0 0.0
    %372 = vmatprep.subr.mxu0 0.0
    %373 = vmatpush2.msra.mxu0 0.0
    %374 = vmatprep.subr.mxu0 0.0
    %375 = vmatpush2.msra.mxu0 0.0
    %376 = vmatprep.subr.mxu0 0.0
    %377 = vmatpush2.msra.mxu0 0.0
    %378 = vmatprep.subr.mxu0 0.0
    %379 = vmatpush2.msra.mxu0 0.0
    %380 = vmatprep.subr.mxu0 0.0
    %381 = vmatpush2.msra.mxu0 0.0
    %382 = vmatprep.subr.mxu0 0.0
    %383 = vmatpush2.msra.mxu0 0.0
    %384 = vmatprep.subr.mxu0 0.0
    %385 = vmatpush2.msra.mxu0 0.0
    %386 = vmatprep.subr.mxu0 0.0
    %387 = vmatpush2.msra.mxu0 0.0
    %388 = vmatprep.subr.mxu0 0.0
    %389 = vmatpush2.msra.mxu0 0.0
    %390 = vmatprep.subr.mxu0 0.0
    %391 = vmatpush2.msra.mxu0 0.0
    %392 = vmatprep.subr.mxu0 0.0
    %393 = vmatpush2.msra.mxu0 0.0
    %394 = vmatprep.mubr.f32.mxu0 0.0
    %395 = vmatmul.mubr.f32.gmra.mxu0 %v328
    %v396 = vpop.f32.mrf.mxu0
    %v397 = vadd.f32 %v326, %v396
    %v398 = vpop.f32.mrf.mxu0
    %399 = vdwg.mxu0
    %400 = vst [vmem:[#allocation8] sm:$0xff] %v397
    // Predicated region
    $region38: #{tpu_custom_call.1} parent=1 // pred_check
      _
    $region39: #{tpu_custom_call.1} parent=1 // pred_check_branch
      %402 = sbr.rel (0) target = $region41
    $region40: #{tpu_custom_call.1} parent=1 // pred_region
      %s404 = ssub.s32 128, 128
      %405 = vsyncadd [#allocation4], %s404
      %s407 = sshll.u32 [#allocation8], 4
      %s408 = int_to_ptr.vmem [resolvable:$true] %s407
      %410 = dma.vmem_to_hbm [thread:$0]  %s408, 128, %s6, [#allocation4]
    $region41: #{tpu_custom_call.1} parent=1 // pred_fallthru
      _
    // Predicated region
    $region42: #{tpu_custom_call.1} parent=1 // pred_check
      _
    $region43: #{tpu_custom_call.1} parent=1 // pred_check_branch
      %412 = sbr.rel (0) target = $region45
    $region44: #{tpu_custom_call.1} parent=1 // pred_region
      %413 = dma.done [#allocation4], 128
    $region45: #{tpu_custom_call.1} parent=1 // pred_fallthru
      _
    %414 = vsyncpa [#allocation3], 1
    %415 = vsyncpa [#allocation6], 1
    %416 = vsyncpa [#allocation4], 1

</llo_original>
